<compile_context>
chip_gen: v5e
topology: v5e:2x2
jax: 0.10.0
libtpu: 0.0.40
codegen_flags: <defaults>
</compile_context>

<pallas_src>
import functools
import math

import numpy as np
import jax
import jax.numpy as jnp
from jax.experimental import pallas as pl
from jax.experimental.pallas import tpu as pltpu


# ----------------------------------------------------------------------------
# Small host-side helpers.
# ----------------------------------------------------------------------------
def _round_up(x: int, m: int) -> int:
    return -(-x // m) * m


def _sublane_pack(dtype) -> int:
    # Rows per sublane-packed tile: 8 for 32-bit, 16 for bf16/f16, 32 for 8-bit.
    return 8 * max(1, 4 // jnp.dtype(dtype).itemsize)


def _sel_dtype(x_dtype):
    # bf16 selector (exact 0/1) keeps the MXU single-pass for bf16 inputs;
    # everything else uses f32 (exact for one-hot, promotes f16 to f32).
    return jnp.bfloat16 if jnp.dtype(x_dtype) == jnp.bfloat16 else jnp.float32


def _nearest_src(in_size: int, out_size: int, scale: float) -> np.ndarray:
    # PyTorch mode='nearest' with scale_factor given: src = floor(dst / scale),
    # clamped; identical to floor(dst * in / out) for integer scales.
    src = np.floor(np.arange(out_size, dtype=np.float64) / float(scale)).astype(np.int64)
    return np.clip(src, 0, in_size - 1)


@functools.lru_cache(maxsize=128)
def _selector(in_size: int, out_size: int, scale: float, dtype_name: str,
              out_first: bool):
    """Cached one-hot selector: (in,out) for x @ S, or (out,in) for S @ x."""
    src = _nearest_src(in_size, out_size, scale)
    sel = (np.arange(in_size)[:, None] == src[None, :]).astype(np.float32)
    if out_first:
        sel = sel.T
    return jnp.asarray(sel, dtype=jnp.dtype(dtype_name))


def _maybe_vmem_limit(est_bytes: int):
    """Only set an explicit scoped-VMEM limit when the (fully-accounted)
    estimate may exceed the defaults; cap by the chip's physical VMEM."""
    if est_bytes <= 10 * 1024 * 1024:      # inside even v5e's 16 MiB default
        return None
    try:
        cap = pltpu.get_tpu_info().vmem_capacity_bytes
    except Exception:                      # pragma: no cover - conservative
        cap = 64 * 1024 * 1024             # v7x physical (smallest generation)
    return int(min(0.85 * cap, max(32 * 1024 * 1024, 1.5 * est_bytes)))


# ----------------------------------------------------------------------------
# Kernels.
# ----------------------------------------------------------------------------
def _rows_kernel_sel(x_ref, sel_ref, o_ref):
    # x: (tr, W)   sel: (W, Ws) resident one-hot   o: (tr, s_h, Ws)
    y = jnp.dot(x_ref[...], sel_ref[...],
                preferred_element_type=jnp.float32).astype(o_ref.dtype)
    # H replication is a pure sublane broadcast into the output view.
    o_ref[...] = jnp.broadcast_to(y[:, None, :], o_ref.shape)


def _rows_kernel_copy(x_ref, o_ref):
    # s_w == 1: pure row replication, no MXU at all.
    o_ref[...] = jnp.broadcast_to(x_ref[...][:, None, :], o_ref.shape)


def _planes_kernel(x_ref, uh_ref, uwt_ref, o_ref, *, h_first, tp):
    # Fractional-scale path: x: (tp, H, W)  uh: (Hs, H)  uwt: (W, Ws)
    uh = uh_ref[...]
    uwt = uwt_ref[...]
    for p in range(tp):                    # static unroll, tp is small
        xp = x_ref[p]                      # (H, W)
        if h_first:
            t = jnp.dot(uh, xp, preferred_element_type=jnp.float32).astype(xp.dtype)
            o = jnp.dot(t, uwt, preferred_element_type=jnp.float32)
        else:
            t = jnp.dot(xp, uwt, preferred_element_type=jnp.float32).astype(xp.dtype)
            o = jnp.dot(uh, t, preferred_element_type=jnp.float32)
        o_ref[p] = o.astype(o_ref.dtype)


# ----------------------------------------------------------------------------
# Wrappers.
# ----------------------------------------------------------------------------
def _upsample_integer(x, s_h, s_w, Hs, Ws):
    """Integer scale factors: unified row-tiled path (planes batched)."""
    N, C, H, W = x.shape
    R = N * C * H
    dtype = x.dtype
    isz = jnp.dtype(dtype).itemsize
    pack = _sublane_pack(dtype)
    need_sel = (s_w != 1)
    sel_dt = _sel_dtype(dtype)
    sel_bytes = W * Ws * jnp.dtype(sel_dt).itemsize if need_sel else 0

    # --- VMEM plan: double-buffered in/out blocks (with the padded layout of
    # --- the (s_h, Ws) minor dims), f32 intermediate, resident selector.
    budget = 10 * 1024 * 1024
    s_h_pad = _round_up(s_h, pack)
    w_pad = _round_up(W, 128)
    ws_pad = _round_up(Ws, 128)
    per_row = (2 * w_pad * isz                       # input block
               + 2 * s_h_pad * ws_pad * isz          # output block (padded)
               + (ws_pad * 4 if need_sel else 0))    # f32 matmul intermediate
    fixed = 2 * sel_bytes + (1 << 20)                # selector + compiler slop
    avail = budget - fixed
    rows = pack
    if avail > per_row * pack:
        rows = (avail // per_row) // pack * pack
    tr = R if rows >= R else rows
    est = fixed + per_row * min(tr, max(rows, pack))
    vlim = _maybe_vmem_limit(est)

    x2 = x.reshape(R, W)                             # free (contiguous) reshape
    in_specs = [pl.BlockSpec((tr, W), lambda r: (r, 0))]
    args = [x2]
    if need_sel:
        # Constant index_map -> selector is DMA'd once and stays resident.
        in_specs.append(pl.BlockSpec((W, Ws), lambda r: (0, 0)))
        args.append(_selector(W, Ws, float(s_w), jnp.dtype(sel_dt).name, False))

    out = pl.pallas_call(
        _rows_kernel_sel if need_sel else _rows_kernel_copy,
        out_shape=jax.ShapeDtypeStruct((R, s_h, Ws), dtype),
        grid_spec=pltpu.PrefetchScalarGridSpec(
            num_scalar_prefetch=0,
            grid=(pl.cdiv(R, tr),),
            in_specs=in_specs,
            out_specs=pl.BlockSpec((tr, s_h, Ws), lambda r: (r, 0, 0)),
        ),
        compiler_params=pltpu.CompilerParams(
            dimension_semantics=("parallel",),
            vmem_limit_bytes=vlim),
    )(*args)
    return out.reshape(N, C, Hs, Ws)                 # free (contiguous) reshape


def _upsample_fractional(x, sh, sw, Hs, Ws):
    """Fractional scale factors: per-plane one-hot selector matmuls."""
    N, C, H, W = x.shape
    NC = N * C
    dtype = x.dtype
    isz = jnp.dtype(dtype).itemsize
    pack = _sublane_pack(dtype)
    sel_dt = _sel_dtype(dtype)
    sel_name = jnp.dtype(sel_dt).name
    sel_isz = jnp.dtype(sel_dt).itemsize

    uh = _selector(H, Hs, float(sh), sel_name, True)     # (Hs, H)
    uwt = _selector(W, Ws, float(sw), sel_name, False)   # (W, Ws)

    # FLOP-minimal contraction order.
    h_first = (Hs * H * W + Hs * W * Ws) <= (H * W * Ws + Hs * H * Ws)

    # Plane batch sized against a fully-accounted VMEM estimate.
    w_pad, ws_pad = _round_up(W, 128), _round_up(Ws, 128)
    h_pad, hs_pad = _round_up(H, pack), _round_up(Hs, pack)
    per_plane = (2 * h_pad * w_pad * isz + 2 * hs_pad * ws_pad * isz
                 + (hs_pad * w_pad if h_first else h_pad * ws_pad) * 4)
    sel_bytes = (Hs * H + W * Ws) * sel_isz
    fixed = 2 * sel_bytes + (1 << 20)
    budget = 10 * 1024 * 1024
    tp = 1
    if budget > fixed + per_plane:
        tp = int(max(1, min(NC, 8, (budget - fixed) // per_plane)))
    est = fixed + per_plane * tp
    vlim = _maybe_vmem_limit(est)
    # TODO(synk): tile H (input-row windows via floor(h_out*H/Hs)) so very
    # large fractional-scale planes also fit v7x's 64 MiB VMEM.

    x3 = x.reshape(NC, H, W)
    out = pl.pallas_call(
        functools.partial(_planes_kernel, h_first=h_first, tp=tp),
        out_shape=jax.ShapeDtypeStruct((NC, Hs, Ws), dtype),
        grid_spec=pltpu.PrefetchScalarGridSpec(
            num_scalar_prefetch=0,
            grid=(pl.cdiv(NC, tp),),
            in_specs=[
                pl.BlockSpec((tp, H, W), lambda b: (b, 0, 0)),
                pl.BlockSpec((Hs, H), lambda b: (0, 0)),   # resident
                pl.BlockSpec((W, Ws), lambda b: (0, 0)),   # resident
            ],
            out_specs=pl.BlockSpec((tp, Hs, Ws), lambda b: (b, 0, 0)),
        ),
        compiler_params=pltpu.CompilerParams(
            dimension_semantics=("parallel",),
            vmem_limit_bytes=vlim),
    )(x3, uh, uwt)
    return out.reshape(N, C, Hs, Ws)


def _upsample_xla(x, sh, sw, Hs, Ws):
    # TODO(synk): integer/f64 dtypes have no exact MXU path (v7x MXU has no
    # integer mode) -- use a plain XLA nearest gather instead of Pallas.
    H, W = x.shape[2], x.shape[3]
    hi = jnp.asarray(_nearest_src(H, Hs, sh), dtype=jnp.int32)
    wi = jnp.asarray(_nearest_src(W, Ws, sw), dtype=jnp.int32)
    return x[:, :, hi[:, None], wi[None, :]]


def upsample_nearest(x, scale_factor):
    """Equivalent of F.interpolate(x, scale_factor=scale_factor, mode='nearest')."""
    if x.ndim != 4:
        raise ValueError("expected NCHW input")
    N, C, H, W = x.shape
    if isinstance(scale_factor, (tuple, list)):
        sh, sw = float(scale_factor[0]), float(scale_factor[1])
    else:
        sh = sw = float(scale_factor)
    Hs, Ws = int(math.floor(H * sh)), int(math.floor(W * sw))

    if jnp.dtype(x.dtype).name not in ("float32", "bfloat16", "float16"):
        return _upsample_xla(x, sh, sw, Hs, Ws)
    if sh.is_integer() and sw.is_integer() and Hs == H * int(sh) and Ws == W * int(sw):
        return _upsample_integer(x, int(sh), int(sw), Hs, Ws)
    return _upsample_fractional(x, sh, sw, Hs, Ws)


class Upsample:
    """JAX/Pallas equivalent of the PyTorch Upsample module (no parameters)."""

    def __init__(self, scale_factor):
        self.scale_factor = scale_factor

    def __call__(self, x):
        return upsample_nearest(x, self.scale_factor)


if __name__ == "__main__":
    key = jax.random.PRNGKey(0)
    x = jax.random.normal(key, (2, 4, 16, 16), dtype=jnp.float32)

    model = Upsample(scale_factor=2)
    y = jax.block_until_ready(model(x))

    # Reference: nearest-neighbor with integer scale == repeat along H and W.
    x_np = np.asarray(x)
    ref = np.repeat(np.repeat(x_np, 2, axis=2), 2, axis=3)
    assert y.shape == (2, 4, 32, 32), y.shape
    np.testing.assert_allclose(np.asarray(y), ref, rtol=0, atol=0)

    print("KERNEL_OK")
</pallas_src>

<mosaic_0001>
module attributes {stable_mosaic.version = 11 : i64} {
  func.func @_rows_kernel_sel(%arg0: i32, %arg1: memref<128x16xf32, #tpu.memory_space<vmem>>, %arg2: memref<16x32xf32, #tpu.memory_space<vmem>>, %arg3: memref<128x2x32xf32, #tpu.memory_space<vmem>>) attributes {dimension_semantics = [#tpu.dimension_semantics<parallel>], iteration_bounds = array<i64: 1>, scalar_prefetch = 0 : i64, scratch_operands = 0 : i64, tpu.core_type = #tpu.core_type<tc>, window_params = [{transform_indices = @transform_0, window_bounds = array<i64: 128, 16>}, {pipeline_mode = #tpu.pipeline_mode<synchronous>, transform_indices = @transform_1, window_bounds = array<i64: 16, 32>}, {transform_indices = @transform_2, window_bounds = array<i64: 128, 2, 32>}]} {
    %c0 = arith.constant 0 : index
    %c0_0 = arith.constant 0 : index
    %0 = vector.load %arg1[%c0, %c0_0] : memref<128x16xf32, #tpu.memory_space<vmem>>, vector<128x16xf32>
    %c0_1 = arith.constant 0 : index
    %c0_2 = arith.constant 0 : index
    %1 = vector.load %arg2[%c0_1, %c0_2] : memref<16x32xf32, #tpu.memory_space<vmem>>, vector<16x32xf32>
    %cst = arith.constant dense<0.000000e+00> : vector<128x32xf32>
    %2 = tpu.matmul %0, %1, %cst {dimension_numbers = #tpu.dot_dimension_numbers<[1], [0], [0], [1], [0, 0, 1, 1], [], []>} : vector<128x16xf32>, vector<16x32xf32>, vector<128x32xf32> -> vector<128x32xf32>
    %3 = vector.shape_cast %2 : vector<128x32xf32> to vector<128x1x32xf32>
    %4 = vector.shape_cast %3 : vector<128x1x32xf32> to vector<128x1x32xf32>
    %5 = vector.broadcast %4 : vector<128x1x32xf32> to vector<128x2x32xf32>
    %c0_3 = arith.constant 0 : index
    %c0_4 = arith.constant 0 : index
    %c0_5 = arith.constant 0 : index
    %6 = vector.load %arg3[%c0_3, %c0_4, %c0_5] : memref<128x2x32xf32, #tpu.memory_space<vmem>>, vector<128x2x32xf32>
    tpu.vector_store %arg3[%c0_3, %c0_4, %c0_5], %5 {strides = array<i32>} : memref<128x2x32xf32, #tpu.memory_space<vmem>>, vector<128x2x32xf32>,
    return
  }
  func.func @transform_0(%arg0: i32) -> (i32, i32) {
    %c0_i32 = arith.constant 0 : i32
    %c0_i32_0 = arith.constant 0 : i32
    return %arg0, %c0_i32 : i32, i32
  }
  func.func @transform_1(%arg0: i32) -> (i32, i32) {
    %c0_i32 = arith.constant 0 : i32
    %c0_i32_0 = arith.constant 0 : i32
    %c0_i32_1 = arith.constant 0 : i32
    return %c0_i32, %c0_i32_0 : i32, i32
  }
  func.func @transform_2(%arg0: i32) -> (i32, i32, i32) {
    %c0_i32 = arith.constant 0 : i32
    %c0_i32_0 = arith.constant 0 : i32
    %c0_i32_1 = arith.constant 0 : i32
    return %arg0, %c0_i32, %c0_i32_0 : i32, i32, i32
  }
}

</mosaic_0001>

<llo_original>
// kernel: tpu_custom_call.1
$region0: #{tpu_custom_call.1}
  #allocation0 [shape = 'u32[]', space=smem, size = 0x4, offset = 0x4, fixed_abs, tag = 'smem constant byte address 0x4 - core index']
  #allocation1 [shape = 'u32[72,128]{1,0:T(1,128)}', space=vmem, size = 0x9000, scoped, tag = 'internal scratch']
  %s0 = inlined_call_operand.vmem [shape: f32[128,16], index: 0, kind: input, shape index: {}]
  %s1 = inlined_call_operand.vmem [shape: f32[16,32], index: 1, kind: input, shape index: {}]
  %s2 = inlined_call_operand.vmem [shape: f32[128,2,32], index: 2, kind: output, shape index: {}]
  %s3 = sld [smem:[#allocation0]]
  $region18: #{tpu_custom_call.1} parent=0
    _
  %s5 = ssub.s32 1, %s3
  %s6 = scalar_select 0, %s5, %s3
  // Predicated region
  $region2: #{tpu_custom_call.1} parent=0 // pred_check
    _
  $region3: #{tpu_custom_call.1} parent=0 // pred_check_branch
    %8 = sbr.rel (0) target = $region5
  $region4: #{tpu_custom_call.1} parent=0 // pred_region
    _
  $region5: #{tpu_custom_call.1} parent=0 // pred_fallthru
    _
  // Predicated region
  $region6: #{tpu_custom_call.1} parent=0 // pred_check
    _
  $region7: #{tpu_custom_call.1} parent=0 // pred_check_branch
    %10 = sbr.rel (0) target = $region9
  $region8: #{tpu_custom_call.1} parent=0 // pred_region
    _
  $region9: #{tpu_custom_call.1} parent=0 // pred_fallthru
    _
  %v11 = vld [vmem:[%s0] sm:$0xff]
  %v12 = vld [vmem:[%s0 + $0x8] sm:$0xff]
  %v13 = vld [vmem:[%s0 + $0x10] sm:$0xff]
  %v14 = vld [vmem:[%s0 + $0x18] sm:$0xff]
  %v15 = vld [vmem:[%s0 + $0x20] sm:$0xff]
  %v16 = vld [vmem:[%s0 + $0x28] sm:$0xff]
  %v17 = vld [vmem:[%s0 + $0x30] sm:$0xff]
  %v18 = vld [vmem:[%s0 + $0x38] sm:$0xff]
  %v19 = vld [vmem:[%s0 + $0x40] sm:$0xff]
  %v20 = vld [vmem:[%s0 + $0x48] sm:$0xff]
  %v21 = vld [vmem:[%s0 + $0x50] sm:$0xff]
  %v22 = vld [vmem:[%s0 + $0x58] sm:$0xff]
  %v23 = vld [vmem:[%s0 + $0x60] sm:$0xff]
  %v24 = vld [vmem:[%s0 + $0x68] sm:$0xff]
  %v25 = vld [vmem:[%s0 + $0x70] sm:$0xff]
  %v26 = vld [vmem:[%s0 + $0x78] sm:$0xff]
  %v27 = vld [vmem:[%s1] sm:$0xff]
  %v28 = vld [vmem:[%s1 + $0x8] sm:$0xff]
  %vm29 = vcmask 130048
  %v31 = vsel %vm29, %v11, 0
  %v34 = vsel %vm29, %v12, 0
  %v37 = vsel %vm29, %v13, 0
  %v40 = vsel %vm29, %v14, 0
  %v43 = vsel %vm29, %v15, 0
  %v46 = vsel %vm29, %v16, 0
  %v49 = vsel %vm29, %v17, 0
  %v52 = vsel %vm29, %v18, 0
  %v55 = vsel %vm29, %v19, 0
  %v58 = vsel %vm29, %v20, 0
  %v61 = vsel %vm29, %v21, 0
  %v64 = vsel %vm29, %v22, 0
  %v67 = vsel %vm29, %v23, 0
  %v70 = vsel %vm29, %v24, 0
  %v73 = vsel %vm29, %v25, 0
  %v76 = vsel %vm29, %v26, 0
  %78 = vmatpush.msra.mxu0 0.0
  %79 = vmatpush.msra.mxu0 0.0
  %80 = vmatpush.msra.mxu0 0.0
  %81 = vmatpush.msra.mxu0 0.0
  %82 = vmatpush.msra.mxu0 0.0
  %83 = vmatpush.msra.mxu0 0.0
  %84 = vmatpush.msra.mxu0 0.0
  %85 = vmatpush.msra.mxu0 0.0
  %86 = vmatpush.msra.mxu0 0.0
  %87 = vmatpush.msra.mxu0 0.0
  %88 = vmatpush.msra.mxu0 0.0
  %89 = vmatpush.msra.mxu0 0.0
  %90 = vmatpush.msra.mxu0 0.0
  %91 = vmatpush.msra.mxu0 0.0
  %92 = vmatpush.msra.mxu0 %v28
  %93 = vmatpush.msra.mxu0 %v27
  %94 = vmatmul.f32.gmra.mxu0 %v31
  %v95 = vpop.f32.mrf.mxu0
  %v96 = vadd.f32 0.0, %v95
  %97 = vmatmul.f32.gmra.mxu0 %v34
  %v98 = vpop.f32.mrf.mxu0
  %v99 = vadd.f32 0.0, %v98
  %100 = vmatmul.f32.gmra.mxu0 %v37
  %v101 = vpop.f32.mrf.mxu0
  %v102 = vadd.f32 0.0, %v101
  %103 = vmatmul.f32.gmra.mxu0 %v40
  %v104 = vpop.f32.mrf.mxu0
  %v105 = vadd.f32 0.0, %v104
  %106 = vmatmul.f32.gmra.mxu0 %v43
  %v107 = vpop.f32.mrf.mxu0
  %v108 = vadd.f32 0.0, %v107
  %109 = vmatmul.f32.gmra.mxu0 %v46
  %v110 = vpop.f32.mrf.mxu0
  %v111 = vadd.f32 0.0, %v110
  %112 = vmatmul.f32.gmra.mxu0 %v49
  %v113 = vpop.f32.mrf.mxu0
  %v114 = vadd.f32 0.0, %v113
  %115 = vmatmul.f32.gmra.mxu0 %v52
  %v116 = vpop.f32.mrf.mxu0
  %v117 = vadd.f32 0.0, %v116
  %118 = vmatmul.f32.gmra.mxu0 %v55
  %v119 = vpop.f32.mrf.mxu0
  %v120 = vadd.f32 0.0, %v119
  %121 = vmatmul.f32.gmra.mxu0 %v58
  %v122 = vpop.f32.mrf.mxu0
  %v123 = vadd.f32 0.0, %v122
  %124 = vmatmul.f32.gmra.mxu0 %v61
  %v125 = vpop.f32.mrf.mxu0
  %v126 = vadd.f32 0.0, %v125
  %127 = vmatmul.f32.gmra.mxu0 %v64
  %v128 = vpop.f32.mrf.mxu0
  %v129 = vadd.f32 0.0, %v128
  %130 = vmatmul.f32.gmra.mxu0 %v67
  %v131 = vpop.f32.mrf.mxu0
  %v132 = vadd.f32 0.0, %v131
  %133 = vmatmul.f32.gmra.mxu0 %v70
  %v134 = vpop.f32.mrf.mxu0
  %v135 = vadd.f32 0.0, %v134
  %136 = vmatmul.f32.gmra.mxu0 %v73
  %v137 = vpop.f32.mrf.mxu0
  %v138 = vadd.f32 0.0, %v137
  %139 = vmatmul.f32.gmra.mxu0 %v76
  %v140 = vpop.f32.mrf.mxu0
  %v141 = vadd.f32 0.0, %v140
  %142 = vdwg.mxu0
  %v159 = vrot.slane %v96, 1
  %v160 = vrot.slane %v96, 2
  %v161 = vrot.slane %v96, 3
  %v162 = vrot.slane %v96, 4
  %v163 = vrot.slane %v96, 5
  %v164 = vrot.slane %v96, 6
  %v165 = vrot.slane %v96, 7
  %v166 = vrot.slane %v99, 1
  %v167 = vrot.slane %v99, 2
  %v168 = vrot.slane %v99, 3
  %v169 = vrot.slane %v99, 4
  %v170 = vrot.slane %v99, 5
  %v171 = vrot.slane %v99, 6
  %v172 = vrot.slane %v99, 7
  %v173 = vrot.slane %v102, 1
  %v174 = vrot.slane %v102, 2
  %v175 = vrot.slane %v102, 3
  %v176 = vrot.slane %v102, 4
  %v177 = vrot.slane %v102, 5
  %v178 = vrot.slane %v102, 6
  %v179 = vrot.slane %v102, 7
  %v180 = vrot.slane %v105, 1
  %v181 = vrot.slane %v105, 2
  %v182 = vrot.slane %v105, 3
  %v183 = vrot.slane %v105, 4
  %v184 = vrot.slane %v105, 5
  %v185 = vrot.slane %v105, 6
  %v186 = vrot.slane %v105, 7
  %v187 = vrot.slane %v108, 1
  %v188 = vrot.slane %v108, 2
  %v189 = vrot.slane %v108, 3
  %v190 = vrot.slane %v108, 4
  %v191 = vrot.slane %v108, 5
  %v192 = vrot.slane %v108, 6
  %v193 = vrot.slane %v108, 7
  %v194 = vrot.slane %v111, 1
  %v195 = vrot.slane %v111, 2
  %v196 = vrot.slane %v111, 3
  %v197 = vrot.slane %v111, 4
  %v198 = vrot.slane %v111, 5
  %v199 = vrot.slane %v111, 6
  %v200 = vrot.slane %v111, 7
  %v201 = vrot.slane %v114, 1
  %v202 = vrot.slane %v114, 2
  %v203 = vrot.slane %v114, 3
  %v204 = vrot.slane %v114, 4
  %v205 = vrot.slane %v114, 5
  %v206 = vrot.slane %v114, 6
  %v207 = vrot.slane %v114, 7
  %v208 = vrot.slane %v117, 1
  %v209 = vrot.slane %v117, 2
  %v210 = vrot.slane %v117, 3
  %v211 = vrot.slane %v117, 4
  %v212 = vrot.slane %v117, 5
  %v213 = vrot.slane %v117, 6
  %v214 = vrot.slane %v117, 7
  %v215 = vrot.slane %v120, 1
  %v216 = vrot.slane %v120, 2
  %v217 = vrot.slane %v120, 3
  %v218 = vrot.slane %v120, 4
  %v219 = vrot.slane %v120, 5
  %v220 = vrot.slane %v120, 6
  %v221 = vrot.slane %v120, 7
  %v222 = vrot.slane %v123, 1
  %v223 = vrot.slane %v123, 2
  %v224 = vrot.slane %v123, 3
  %v225 = vrot.slane %v123, 4
  %v226 = vrot.slane %v123, 5
  %v227 = vrot.slane %v123, 6
  %v228 = vrot.slane %v123, 7
  %v229 = vrot.slane %v126, 1
  %v230 = vrot.slane %v126, 2
  %v231 = vrot.slane %v126, 3
  %v232 = vrot.slane %v126, 4
  %v233 = vrot.slane %v126, 5
  %v234 = vrot.slane %v126, 6
  %v235 = vrot.slane %v126, 7
  %v236 = vrot.slane %v129, 1
  %v237 = vrot.slane %v129, 2
  %v238 = vrot.slane %v129, 3
  %v239 = vrot.slane %v129, 4
  %v240 = vrot.slane %v129, 5
  %v241 = vrot.slane %v129, 6
  %v242 = vrot.slane %v129, 7
  %v243 = vrot.slane %v132, 1
  %v244 = vrot.slane %v132, 2
  %v245 = vrot.slane %v132, 3
  %v246 = vrot.slane %v132, 4
  %v247 = vrot.slane %v132, 5
  %v248 = vrot.slane %v132, 6
  %v249 = vrot.slane %v132, 7
  %v250 = vrot.slane %v135, 1
  %v251 = vrot.slane %v135, 2
  %v252 = vrot.slane %v135, 3
  %v253 = vrot.slane %v135, 4
  %v254 = vrot.slane %v135, 5
  %v255 = vrot.slane %v135, 6
  %v256 = vrot.slane %v135, 7
  %v257 = vrot.slane %v138, 1
  %v258 = vrot.slane %v138, 2
  %v259 = vrot.slane %v138, 3
  %v260 = vrot.slane %v138, 4
  %v261 = vrot.slane %v138, 5
  %v262 = vrot.slane %v138, 6
  %v263 = vrot.slane %v138, 7
  %v264 = vrot.slane %v141, 1
  %v265 = vrot.slane %v141, 2
  %v266 = vrot.slane %v141, 3
  %v267 = vrot.slane %v141, 4
  %v268 = vrot.slane %v141, 5
  %v269 = vrot.slane %v141, 6
  %v270 = vrot.slane %v141, 7
  %v271 = vperm.slane %v96, 0
  %v272 = vperm.slane %v159, 0
  %v273 = vperm.slane %v160, 0
  %v274 = vperm.slane %v161, 0
  %v275 = vperm.slane %v162, 0
  %v276 = vperm.slane %v163, 0
  %v277 = vperm.slane %v164, 0
  %v278 = vperm.slane %v165, 0
  %v279 = vperm.slane %v99, 0
  %v280 = vperm.slane %v166, 0
  %v281 = vperm.slane %v167, 0
  %v282 = vperm.slane %v168, 0
  %v283 = vperm.slane %v169, 0
  %v284 = vperm.slane %v170, 0
  %v285 = vperm.slane %v171, 0
  %v286 = vperm.slane %v172, 0
  %v287 = vperm.slane %v102, 0
  %v288 = vperm.slane %v173, 0
  %v289 = vperm.slane %v174, 0
  %v290 = vperm.slane %v175, 0
  %v291 = vperm.slane %v176, 0
  %v292 = vperm.slane %v177, 0
  %v293 = vperm.slane %v178, 0
  %v294 = vperm.slane %v179, 0
  %v295 = vperm.slane %v105, 0
  %v296 = vperm.slane %v180, 0
  %v297 = vperm.slane %v181, 0
  %v298 = vperm.slane %v182, 0
  %v299 = vperm.slane %v183, 0
  %v300 = vperm.slane %v184, 0
  %v301 = vperm.slane %v185, 0
  %v302 = vperm.slane %v186, 0
  %v303 = vperm.slane %v108, 0
  %v304 = vperm.slane %v187, 0
  %v305 = vperm.slane %v188, 0
  %v306 = vperm.slane %v189, 0
  %v307 = vperm.slane %v190, 0
  %v308 = vperm.slane %v191, 0
  %v309 = vperm.slane %v192, 0
  %v310 = vperm.slane %v193, 0
  %v311 = vperm.slane %v111, 0
  %v312 = vperm.slane %v194, 0
  %v313 = vperm.slane %v195, 0
  %v314 = vperm.slane %v196, 0
  %v315 = vperm.slane %v197, 0
  %v316 = vperm.slane %v198, 0
  %v317 = vperm.slane %v199, 0
  %v318 = vperm.slane %v200, 0
  %v319 = vperm.slane %v114, 0
  %v320 = vperm.slane %v201, 0
  %v321 = vperm.slane %v202, 0
  %v322 = vperm.slane %v203, 0
  %v323 = vperm.slane %v204, 0
  %v324 = vperm.slane %v205, 0
  %v325 = vperm.slane %v206, 0
  %v326 = vperm.slane %v207, 0
  %v327 = vperm.slane %v117, 0
  %v328 = vperm.slane %v208, 0
  %v329 = vperm.slane %v209, 0
  %v330 = vperm.slane %v210, 0
  %v331 = vperm.slane %v211, 0
  %v332 = vperm.slane %v212, 0
  %v333 = vperm.slane %v213, 0
  %v334 = vperm.slane %v214, 0
  %v335 = vperm.slane %v120, 0
  %v336 = vperm.slane %v215, 0
  %v337 = vperm.slane %v216, 0
  %v338 = vperm.slane %v217, 0
  %v339 = vperm.slane %v218, 0
  %v340 = vperm.slane %v219, 0
  %v341 = vperm.slane %v220, 0
  %v342 = vperm.slane %v221, 0
  %v343 = vperm.slane %v123, 0
  %v344 = vperm.slane %v222, 0
  %v345 = vperm.slane %v223, 0
  %v346 = vperm.slane %v224, 0
  %v347 = vperm.slane %v225, 0
  %v348 = vperm.slane %v226, 0
  %v349 = vperm.slane %v227, 0
  %v350 = vperm.slane %v228, 0
  %v351 = vperm.slane %v126, 0
  %v352 = vperm.slane %v229, 0
  %v353 = vperm.slane %v230, 0
  %v354 = vperm.slane %v231, 0
  %v355 = vperm.slane %v232, 0
  %v356 = vperm.slane %v233, 0
  %v357 = vperm.slane %v234, 0
  %v358 = vperm.slane %v235, 0
  %v359 = vperm.slane %v129, 0
  %v360 = vperm.slane %v236, 0
  %v361 = vperm.slane %v237, 0
  %v362 = vperm.slane %v238, 0
  %v363 = vperm.slane %v239, 0
  %v364 = vperm.slane %v240, 0
  %v365 = vperm.slane %v241, 0
  %v366 = vperm.slane %v242, 0
  %v367 = vperm.slane %v132, 0
  %v368 = vperm.slane %v243, 0
  %v369 = vperm.slane %v244, 0
  %v370 = vperm.slane %v245, 0
  %v371 = vperm.slane %v246, 0
  %v372 = vperm.slane %v247, 0
  %v373 = vperm.slane %v248, 0
  %v374 = vperm.slane %v249, 0
  %v375 = vperm.slane %v135, 0
  %v376 = vperm.slane %v250, 0
  %v377 = vperm.slane %v251, 0
  %v378 = vperm.slane %v252, 0
  %v379 = vperm.slane %v253, 0
  %v380 = vperm.slane %v254, 0
  %v381 = vperm.slane %v255, 0
  %v382 = vperm.slane %v256, 0
  %v383 = vperm.slane %v138, 0
  %v384 = vperm.slane %v257, 0
  %v385 = vperm.slane %v258, 0
  %v386 = vperm.slane %v259, 0
  %v387 = vperm.slane %v260, 0
  %v388 = vperm.slane %v261, 0
  %v389 = vperm.slane %v262, 0
  %v390 = vperm.slane %v263, 0
  %v391 = vperm.slane %v141, 0
  %v392 = vperm.slane %v264, 0
  %v393 = vperm.slane %v265, 0
  %v394 = vperm.slane %v266, 0
  %v395 = vperm.slane %v267, 0
  %v396 = vperm.slane %v268, 0
  %v397 = vperm.slane %v269, 0
  %v398 = vperm.slane %v270, 0
  %vm527 = vcmask 254976
  %528 = vst.msk [vmem:[%s2] sm:$0x3] %vm527, %v271
  %529 = vst.msk [vmem:[%s2 + $0x2] sm:$0x3] %vm527, %v272
  %530 = vst.msk [vmem:[%s2 + $0x4] sm:$0x3] %vm527, %v273
  %531 = vst.msk [vmem:[%s2 + $0x6] sm:$0x3] %vm527, %v274
  %532 = vst.msk [vmem:[%s2 + $0x8] sm:$0x3] %vm527, %v275
  %533 = vst.msk [vmem:[%s2 + $0xa] sm:$0x3] %vm527, %v276
  %534 = vst.msk [vmem:[%s2 + $0xc] sm:$0x3] %vm527, %v277
  %535 = vst.msk [vmem:[%s2 + $0xe] sm:$0x3] %vm527, %v278
  %536 = vst.msk [vmem:[%s2 + $0x10] sm:$0x3] %vm527, %v279
  %537 = vst.msk [vmem:[%s2 + $0x12] sm:$0x3] %vm527, %v280
  %538 = vst.msk [vmem:[%s2 + $0x14] sm:$0x3] %vm527, %v281
  %539 = vst.msk [vmem:[%s2 + $0x16] sm:$0x3] %vm527, %v282
  %540 = vst.msk [vmem:[%s2 + $0x18] sm:$0x3] %vm527, %v283
  %541 = vst.msk [vmem:[%s2 + $0x1a] sm:$0x3] %vm527, %v284
  %542 = vst.msk [vmem:[%s2 + $0x1c] sm:$0x3] %vm527, %v285
  %543 = vst.msk [vmem:[%s2 + $0x1e] sm:$0x3] %vm527, %v286
  %544 = vst.msk [vmem:[%s2 + $0x20] sm:$0x3] %vm527, %v287
  %545 = vst.msk [vmem:[%s2 + $0x22] sm:$0x3] %vm527, %v288
  %546 = vst.msk [vmem:[%s2 + $0x24] sm:$0x3] %vm527, %v289
  %547 = vst.msk [vmem:[%s2 + $0x26] sm:$0x3] %vm527, %v290
  %548 = vst.msk [vmem:[%s2 + $0x28] sm:$0x3] %vm527, %v291
  %549 = vst.msk [vmem:[%s2 + $0x2a] sm:$0x3] %vm527, %v292
  %550 = vst.msk [vmem:[%s2 + $0x2c] sm:$0x3] %vm527, %v293
  %551 = vst.msk [vmem:[%s2 + $0x2e] sm:$0x3] %vm527, %v294
  %552 = vst.msk [vmem:[%s2 + $0x30] sm:$0x3] %vm527, %v295
  %553 = vst.msk [vmem:[%s2 + $0x32] sm:$0x3] %vm527, %v296
  %554 = vst.msk [vmem:[%s2 + $0x34] sm:$0x3] %vm527, %v297
  %555 = vst.msk [vmem:[%s2 + $0x36] sm:$0x3] %vm527, %v298
  %556 = vst.msk [vmem:[%s2 + $0x38] sm:$0x3] %vm527, %v299
  %557 = vst.msk [vmem:[%s2 + $0x3a] sm:$0x3] %vm527, %v300
  %558 = vst.msk [vmem:[%s2 + $0x3c] sm:$0x3] %vm527, %v301
  %559 = vst.msk [vmem:[%s2 + $0x3e] sm:$0x3] %vm527, %v302
  %560 = vst.msk [vmem:[%s2 + $0x40] sm:$0x3] %vm527, %v303
  %561 = vst.msk [vmem:[%s2 + $0x42] sm:$0x3] %vm527, %v304
  %562 = vst.msk [vmem:[%s2 + $0x44] sm:$0x3] %vm527, %v305
  %563 = vst.msk [vmem:[%s2 + $0x46] sm:$0x3] %vm527, %v306
  %564 = vst.msk [vmem:[%s2 + $0x48] sm:$0x3] %vm527, %v307
  %565 = vst.msk [vmem:[%s2 + $0x4a] sm:$0x3] %vm527, %v308
  %566 = vst.msk [vmem:[%s2 + $0x4c] sm:$0x3] %vm527, %v309
  %567 = vst.msk [vmem:[%s2 + $0x4e] sm:$0x3] %vm527, %v310
  %568 = vst.msk [vmem:[%s2 + $0x50] sm:$0x3] %vm527, %v311
  %569 = vst.msk [vmem:[%s2 + $0x52] sm:$0x3] %vm527, %v312
  %570 = vst.msk [vmem:[%s2 + $0x54] sm:$0x3] %vm527, %v313
  %571 = vst.msk [vmem:[%s2 + $0x56] sm:$0x3] %vm527, %v314
  %572 = vst.msk [vmem:[%s2 + $0x58] sm:$0x3] %vm527, %v315
  %573 = vst.msk [vmem:[%s2 + $0x5a] sm:$0x3] %vm527, %v316
  %574 = vst.msk [vmem:[%s2 + $0x5c] sm:$0x3] %vm527, %v317
  %575 = vst.msk [vmem:[%s2 + $0x5e] sm:$0x3] %vm527, %v318
  %576 = vst.msk [vmem:[%s2 + $0x60] sm:$0x3] %vm527, %v319
  %577 = vst.msk [vmem:[%s2 + $0x62] sm:$0x3] %vm527, %v320
  %578 = vst.msk [vmem:[%s2 + $0x64] sm:$0x3] %vm527, %v321
  %579 = vst.msk [vmem:[%s2 + $0x66] sm:$0x3] %vm527, %v322
  %580 = vst.msk [vmem:[%s2 + $0x68] sm:$0x3] %vm527, %v323
  %581 = vst.msk [vmem:[%s2 + $0x6a] sm:$0x3] %vm527, %v324
  %582 = vst.msk [vmem:[%s2 + $0x6c] sm:$0x3] %vm527, %v325
  %583 = vst.msk [vmem:[%s2 + $0x6e] sm:$0x3] %vm527, %v326
  %584 = vst.msk [vmem:[%s2 + $0x70] sm:$0x3] %vm527, %v327
  %585 = vst.msk [vmem:[%s2 + $0x72] sm:$0x3] %vm527, %v328
  %586 = vst.msk [vmem:[%s2 + $0x74] sm:$0x3] %vm527, %v329
  %587 = vst.msk [vmem:[%s2 + $0x76] sm:$0x3] %vm527, %v330
  %588 = vst.msk [vmem:[%s2 + $0x78] sm:$0x3] %vm527, %v331
  %589 = vst.msk [vmem:[%s2 + $0x7a] sm:$0x3] %vm527, %v332
  %590 = vst.msk [vmem:[%s2 + $0x7c] sm:$0x3] %vm527, %v333
  %591 = vst.msk [vmem:[%s2 + $0x7e] sm:$0x3] %vm527, %v334
  %592 = vst.msk [vmem:[%s2 + $0x80] sm:$0x3] %vm527, %v335
  %593 = vst.msk [vmem:[%s2 + $0x82] sm:$0x3] %vm527, %v336
  %594 = vst.msk [vmem:[%s2 + $0x84] sm:$0x3] %vm527, %v337
  %595 = vst.msk [vmem:[%s2 + $0x86] sm:$0x3] %vm527, %v338
  %596 = vst.msk [vmem:[%s2 + $0x88] sm:$0x3] %vm527, %v339
  %597 = vst.msk [vmem:[%s2 + $0x8a] sm:$0x3] %vm527, %v340
  %598 = vst.msk [vmem:[%s2 + $0x8c] sm:$0x3] %vm527, %v341
  %599 = vst.msk [vmem:[%s2 + $0x8e] sm:$0x3] %vm527, %v342
  %600 = vst.msk [vmem:[%s2 + $0x90] sm:$0x3] %vm527, %v343
  %601 = vst.msk [vmem:[%s2 + $0x92] sm:$0x3] %vm527, %v344
  %602 = vst.msk [vmem:[%s2 + $0x94] sm:$0x3] %vm527, %v345
  %603 = vst.msk [vmem:[%s2 + $0x96] sm:$0x3] %vm527, %v346
  %604 = vst.msk [vmem:[%s2 + $0x98] sm:$0x3] %vm527, %v347
  %605 = vst.msk [vmem:[%s2 + $0x9a] sm:$0x3] %vm527, %v348
  %606 = vst.msk [vmem:[%s2 + $0x9c] sm:$0x3] %vm527, %v349
  %607 = vst.msk [vmem:[%s2 + $0x9e] sm:$0x3] %vm527, %v350
  %608 = vst.msk [vmem:[%s2 + $0xa0] sm:$0x3] %vm527, %v351
  %609 = vst.msk [vmem:[%s2 + $0xa2] sm:$0x3] %vm527, %v352
  %610 = vst.msk [vmem:[%s2 + $0xa4] sm:$0x3] %vm527, %v353
  %611 = vst.msk [vmem:[%s2 + $0xa6] sm:$0x3] %vm527, %v354
  %612 = vst.msk [vmem:[%s2 + $0xa8] sm:$0x3] %vm527, %v355
  %613 = vst.msk [vmem:[%s2 + $0xaa] sm:$0x3] %vm527, %v356
  %614 = vst.msk [vmem:[%s2 + $0xac] sm:$0x3] %vm527, %v357
  %615 = vst.msk [vmem:[%s2 + $0xae] sm:$0x3] %vm527, %v358
  %616 = vst.msk [vmem:[%s2 + $0xb0] sm:$0x3] %vm527, %v359
  %617 = vst.msk [vmem:[%s2 + $0xb2] sm:$0x3] %vm527, %v360
  %618 = vst.msk [vmem:[%s2 + $0xb4] sm:$0x3] %vm527, %v361
  %619 = vst.msk [vmem:[%s2 + $0xb6] sm:$0x3] %vm527, %v362
  %620 = vst.msk [vmem:[%s2 + $0xb8] sm:$0x3] %vm527, %v363
  %621 = vst.msk [vmem:[%s2 + $0xba] sm:$0x3] %vm527, %v364
  %622 = vst.msk [vmem:[%s2 + $0xbc] sm:$0x3] %vm527, %v365
  %623 = vst.msk [vmem:[%s2 + $0xbe] sm:$0x3] %vm527, %v366
  %624 = vst.msk [vmem:[%s2 + $0xc0] sm:$0x3] %vm527, %v367
  %625 = vst.msk [vmem:[%s2 + $0xc2] sm:$0x3] %vm527, %v368
  %626 = vst.msk [vmem:[%s2 + $0xc4] sm:$0x3] %vm527, %v369
  %627 = vst.msk [vmem:[%s2 + $0xc6] sm:$0x3] %vm527, %v370
  %628 = vst.msk [vmem:[%s2 + $0xc8] sm:$0x3] %vm527, %v371
  %629 = vst.msk [vmem:[%s2 + $0xca] sm:$0x3] %vm527, %v372
  %630 = vst.msk [vmem:[%s2 + $0xcc] sm:$0x3] %vm527, %v373
  %631 = vst.msk [vmem:[%s2 + $0xce] sm:$0x3] %vm527, %v374
  %632 = vst.msk [vmem:[%s2 + $0xd0] sm:$0x3] %vm527, %v375
  %633 = vst.msk [vmem:[%s2 + $0xd2] sm:$0x3] %vm527, %v376
  %634 = vst.msk [vmem:[%s2 + $0xd4] sm:$0x3] %vm527, %v377
  %635 = vst.msk [vmem:[%s2 + $0xd6] sm:$0x3] %vm527, %v378
  %636 = vst.msk [vmem:[%s2 + $0xd8] sm:$0x3] %vm527, %v379
  %637 = vst.msk [vmem:[%s2 + $0xda] sm:$0x3] %vm527, %v380
  %638 = vst.msk [vmem:[%s2 + $0xdc] sm:$0x3] %vm527, %v381
  %639 = vst.msk [vmem:[%s2 + $0xde] sm:$0x3] %vm527, %v382
  %640 = vst.msk [vmem:[%s2 + $0xe0] sm:$0x3] %vm527, %v383
  %641 = vst.msk [vmem:[%s2 + $0xe2] sm:$0x3] %vm527, %v384
  %642 = vst.msk [vmem:[%s2 + $0xe4] sm:$0x3] %vm527, %v385
  %643 = vst.msk [vmem:[%s2 + $0xe6] sm:$0x3] %vm527, %v386
  %644 = vst.msk [vmem:[%s2 + $0xe8] sm:$0x3] %vm527, %v387
  %645 = vst.msk [vmem:[%s2 + $0xea] sm:$0x3] %vm527, %v388
  %646 = vst.msk [vmem:[%s2 + $0xec] sm:$0x3] %vm527, %v389
  %647 = vst.msk [vmem:[%s2 + $0xee] sm:$0x3] %vm527, %v390
  %648 = vst.msk [vmem:[%s2 + $0xf0] sm:$0x3] %vm527, %v391
  %649 = vst.msk [vmem:[%s2 + $0xf2] sm:$0x3] %vm527, %v392
  %650 = vst.msk [vmem:[%s2 + $0xf4] sm:$0x3] %vm527, %v393
  %651 = vst.msk [vmem:[%s2 + $0xf6] sm:$0x3] %vm527, %v394
  %652 = vst.msk [vmem:[%s2 + $0xf8] sm:$0x3] %vm527, %v395
  %653 = vst.msk [vmem:[%s2 + $0xfa] sm:$0x3] %vm527, %v396
  %654 = vst.msk [vmem:[%s2 + $0xfc] sm:$0x3] %vm527, %v397
  %655 = vst.msk [vmem:[%s2 + $0xfe] sm:$0x3] %vm527, %v398
  // Predicated region
  $region10: #{tpu_custom_call.1} parent=0 // pred_check
    _
  $region11: #{tpu_custom_call.1} parent=0 // pred_check_branch
    %657 = sbr.rel (0) target = $region13
  $region12: #{tpu_custom_call.1} parent=0 // pred_region
    _
  $region13: #{tpu_custom_call.1} parent=0 // pred_fallthru
    _
  // Predicated region
  $region14: #{tpu_custom_call.1} parent=0 // pred_check
    _
  $region15: #{tpu_custom_call.1} parent=0 // pred_check_branch
    %659 = sbr.rel (0) target = $region17
  $region16: #{tpu_custom_call.1} parent=0 // pred_region
    _
  $region17: #{tpu_custom_call.1} parent=0 // pred_fallthru
    _

</llo_original>
